<compile_context>
chip_gen: v7x
topology: tpu7x:2x2x1
jax: 0.10.0
libtpu: 0.0.40
codegen_flags: <defaults>
</compile_context>

<pallas_src>
import functools
import math

import jax
import jax.numpy as jnp
from jax.experimental import pallas as pl
from jax.experimental.pallas import tpu as pltpu


def _round_up(x, m):
    return ((x + m - 1) // m) * m


# ----------------------------------------------------------------------------
# Kernel 1: feature transform  XW = X @ W   (row-tiled, bf16 out)
# ----------------------------------------------------------------------------
def feature_transform_kernel(x_ref, w_ref, out_ref):
    out_ref[...] = jnp.dot(
        x_ref[...], w_ref[...], preferred_element_type=jnp.float32
    ).astype(out_ref.dtype)


def _feature_transform(x_pad, w_pad, *, bm, out_dtype):
    n_pad, f_in = x_pad.shape
    f_out = w_pad.shape[1]
    grid = (n_pad // bm,)

    out_isz = jnp.dtype(out_dtype).itemsize
    flops = 2 * n_pad * f_in * f_out
    bytes_accessed = (
        x_pad.size * x_pad.dtype.itemsize
        + w_pad.size * w_pad.dtype.itemsize
        + n_pad * f_out * out_isz
    )
    vmem_needed = (
        2 * bm * f_in * x_pad.dtype.itemsize       # X tiles (double-buffered)
        + 2 * f_in * f_out * w_pad.dtype.itemsize  # W (resident, buffered)
        + 2 * bm * f_out * out_isz                 # out tiles
    )
    vmem_limit = min(max(int(vmem_needed * 1.25) + (4 << 20), 16 << 20), 100 << 20)

    return pl.pallas_call(
        feature_transform_kernel,
        out_shape=jax.ShapeDtypeStruct((n_pad, f_out), out_dtype),
        grid_spec=pltpu.PrefetchScalarGridSpec(
            num_scalar_prefetch=0,
            grid=grid,
            in_specs=[
                pl.BlockSpec((bm, f_in), lambda i: (i, 0)),      # X row tile
                pl.BlockSpec((f_in, f_out), lambda i: (0, 0)),   # W (resident)
            ],
            out_specs=pl.BlockSpec((bm, f_out), lambda i: (i, 0)),
        ),
        compiler_params=pltpu.CompilerParams(
            dimension_semantics=("parallel",),
            vmem_limit_bytes=vmem_limit,
        ),
        cost_estimate=pl.CostEstimate(
            flops=flops, transcendentals=0, bytes_accessed=bytes_accessed
        ),
    )(x_pad, w_pad)


# ----------------------------------------------------------------------------
# Kernel 2: aggregation  OUT = A_hat @ XW + b  (optionally ReLU'd)
# Grid = (row tiles of A, K reduction).  Bias folded into accumulator init.
# ----------------------------------------------------------------------------
def gcn_agg_resident_kernel(a_ref, xw_ref, b_ref, out_ref, acc_ref, *,
                            bk, apply_relu):
    # XW is fully VMEM-resident (constant index_map); slice the K-slab here.
    k = pl.program_id(1)

    @pl.when(k == 0)
    def _():
        acc_ref[...] = jnp.broadcast_to(b_ref[...], acc_ref.shape)

    start = pl.multiple_of(k * bk, bk)
    acc_ref[...] += jnp.dot(a_ref[...], xw_ref[pl.ds(start, bk), :],
                            preferred_element_type=jnp.float32)

    @pl.when(k == pl.num_programs(1) - 1)
    def _():
        y = acc_ref[...]
        if apply_relu:
            y = jnp.maximum(y, 0.0)
        out_ref[...] = y.astype(out_ref.dtype)


def gcn_agg_streamed_kernel(a_ref, xw_ref, b_ref, out_ref, acc_ref, *,
                            apply_relu):
    # Fallback: XW streamed as (bk, f_out) slabs when it does not fit VMEM.
    k = pl.program_id(1)

    @pl.when(k == 0)
    def _():
        acc_ref[...] = jnp.broadcast_to(b_ref[...], acc_ref.shape)

    acc_ref[...] += jnp.dot(a_ref[...], xw_ref[...],
                            preferred_element_type=jnp.float32)

    @pl.when(k == pl.num_programs(1) - 1)
    def _():
        y = acc_ref[...]
        if apply_relu:
            y = jnp.maximum(y, 0.0)
        out_ref[...] = y.astype(out_ref.dtype)


def _gcn_aggregate(a_pad, xw_pad, b_pad, *, apply_relu, out_dtype, bm, bk,
                   vmem_budget):
    n_pad = a_pad.shape[0]
    f_out = xw_pad.shape[1]
    grid = (n_pad // bm, n_pad // bk)

    a_isz = a_pad.dtype.itemsize
    xw_isz = xw_pad.dtype.itemsize
    out_isz = jnp.dtype(out_dtype).itemsize

    # VMEM working set: double-buffered A and out tiles, f32 accumulator, bias.
    base_vmem = (2 * bm * bk * a_isz
                 + 2 * bm * f_out * out_isz
                 + bm * f_out * 4
                 + 2 * f_out * 4)
    xw_resident_vmem = 2 * n_pad * f_out * xw_isz     # conservatively 2-buffered
    xw_streamed_vmem = 2 * bk * f_out * xw_isz

    resident = (base_vmem + xw_resident_vmem) <= vmem_budget

    if resident:
        kernel = functools.partial(gcn_agg_resident_kernel, bk=bk,
                                   apply_relu=apply_relu)
        xw_spec = pl.BlockSpec((n_pad, f_out), lambda i, k: (0, 0))
        xw_traffic = n_pad * f_out * xw_isz                  # fetched once
        vmem_needed = base_vmem + xw_resident_vmem
    else:
        kernel = functools.partial(gcn_agg_streamed_kernel,
                                   apply_relu=apply_relu)
        xw_spec = pl.BlockSpec((bk, f_out), lambda i, k: (k, 0))
        xw_traffic = grid[0] * n_pad * f_out * xw_isz        # re-streamed / row tile
        vmem_needed = base_vmem + xw_streamed_vmem

    flops = 2 * n_pad * n_pad * f_out
    bytes_accessed = (n_pad * n_pad * a_isz          # A_hat streamed once
                      + xw_traffic
                      + f_out * 4                    # bias (constant index_map)
                      + n_pad * f_out * out_isz)     # output writeback

    vmem_limit = min(max(int(vmem_needed * 1.25) + (4 << 20), 16 << 20), 100 << 20)

    return pl.pallas_call(
        kernel,
        out_shape=jax.ShapeDtypeStruct((n_pad, f_out), out_dtype),
        grid_spec=pltpu.PrefetchScalarGridSpec(
            num_scalar_prefetch=0,
            grid=grid,
            in_specs=[
                pl.BlockSpec((bm, bk), lambda i, k: (i, k)),      # A_hat tile
                xw_spec,                                          # XW resident/slab
                pl.BlockSpec((1, f_out), lambda i, k: (0, 0)),    # bias (resident)
            ],
            out_specs=pl.BlockSpec((bm, f_out), lambda i, k: (i, 0)),
            scratch_shapes=[pltpu.VMEM((bm, f_out), jnp.float32)],
        ),
        compiler_params=pltpu.CompilerParams(
            dimension_semantics=("parallel", "arbitrary"),
            vmem_limit_bytes=vmem_limit,
        ),
        cost_estimate=pl.CostEstimate(
            flops=flops, transcendentals=0, bytes_accessed=bytes_accessed
        ),
    )(a_pad, xw_pad, b_pad)


# ----------------------------------------------------------------------------
# Tile selection: per-generation targets, clamped for small graphs.
# ----------------------------------------------------------------------------
def _select_tiles(n):
    vmem_cap = 64 << 20                       # conservative default (v7x per TC)
    try:
        vmem_cap = int(getattr(pltpu.get_tpu_info(), "vmem_capacity_bytes",
                               vmem_cap))
    except Exception:
        pass

    if vmem_cap >= (96 << 20):                # v5e / v6e: 128 MiB physical VMEM
        bm_t, bk_t, budget = 1024, 2048, 80 << 20
    else:                                     # v7x: 64 MiB per TensorCore
        bm_t, bk_t, budget = 512, 1024, 40 << 20

    n_min = _round_up(n, 128)                 # lane/sublane-legal minimum
    bk = min(bk_t, n_min)                     # multiple of 128
    bm = min(bm_t, n_min)                     # multiple of 8
    n_pad = _round_up(n, (bm * bk) // math.gcd(bm, bk))

    # Keep the 'parallel' row axis >= 2 blocks so both v7x TensorCores get work.
    while n_pad // bm < 2 and bm % 16 == 0 and n_pad % (bm // 2) == 0:
        bm //= 2
    return bm, bk, n_pad, budget


# ----------------------------------------------------------------------------
# Glue: edge_index -> dense normalized adjacency (plain JAX).
# ----------------------------------------------------------------------------
def gcn_normalized_adjacency(edge_index, num_nodes):
    """D^{-1/2} (A + remaining self loops) D^{-1/2}; A[i,j]=1 for edge j->i."""
    src, dst = edge_index[0], edge_index[1]
    a = jnp.zeros((num_nodes, num_nodes), jnp.float32)
    a = a.at[dst, src].add(1.0)
    idx = jnp.arange(num_nodes)
    diag = a[idx, idx]
    a = a.at[idx, idx].set(jnp.where(diag > 0, diag, 1.0))
    deg = jnp.sum(a, axis=1)
    dinv = jax.lax.rsqrt(jnp.where(deg > 0, deg, 1.0))
    return a * dinv[:, None] * dinv[None, :]


def glorot(key, fan_in, fan_out):
    limit = (6.0 / (fan_in + fan_out)) ** 0.5
    return jax.random.uniform(key, (fan_in, fan_out), jnp.float32, -limit, limit)


def init_params(key, in_channels, out_channels):
    hidden = 2 * out_channels
    k1, k2, k3 = jax.random.split(key, 3)
    return {
        "w1": glorot(k1, in_channels, hidden),
        "b1": jnp.zeros((1, hidden), jnp.float32),
        "wmu": glorot(k2, hidden, out_channels),
        "bmu": jnp.zeros((1, out_channels), jnp.float32),
        "wls": glorot(k3, hidden, out_channels),
        "bls": jnp.zeros((1, out_channels), jnp.float32),
    }


# ----------------------------------------------------------------------------
# Forward pass.
# ----------------------------------------------------------------------------
def variational_encoder(x, edge_index, params, *, compute_dtype=jnp.bfloat16):
    n, f_in = x.shape
    c = params["wmu"].shape[1]      # out_channels
    h = params["w1"].shape[1]       # hidden = 2 * out_channels

    bm, bk, n_pad, vmem_budget = _select_tiles(n)

    f_in_pad = _round_up(f_in, 128)
    h_pad = _round_up(h, 128)
    c2_pad = _round_up(2 * c, 128)

    a_norm = gcn_normalized_adjacency(edge_index, n)
    a_pad = jnp.zeros((n_pad, n_pad), compute_dtype).at[:n, :n].set(
        a_norm.astype(compute_dtype))
    x_pad = jnp.zeros((n_pad, f_in_pad), compute_dtype).at[:n, :f_in].set(
        x.astype(compute_dtype))

    w1_pad = jnp.zeros((f_in_pad, h_pad), compute_dtype).at[:f_in, :h].set(
        params["w1"].astype(compute_dtype))
    b1_pad = jnp.zeros((1, h_pad), jnp.float32).at[:, :h].set(params["b1"])

    # Fused mu / logstd branch: one concatenated weight and bias.
    w_cat = jnp.concatenate([params["wmu"], params["wls"]], axis=1)
    b_cat = jnp.concatenate([params["bmu"], params["bls"]], axis=1)
    w_cat_pad = jnp.zeros((h_pad, c2_pad), compute_dtype).at[:h, :2 * c].set(
        w_cat.astype(compute_dtype))
    b_cat_pad = jnp.zeros((1, c2_pad), jnp.float32).at[:, :2 * c].set(b_cat)

    # Stage 1: XW1 hoisted once, then H = relu(A_hat @ XW1 + b1)  (bf16).
    xw1 = _feature_transform(x_pad, w1_pad, bm=bm, out_dtype=compute_dtype)
    h_act = _gcn_aggregate(a_pad, xw1, b1_pad, apply_relu=True,
                           out_dtype=compute_dtype, bm=bm, bk=bk,
                           vmem_budget=vmem_budget)

    # Stage 2: XW2 = H @ [Wmu|Wls] hoisted once, then
    #          [MU | LOGSTD] = A_hat @ XW2 + [bmu|bls]   (f32 out).
    xw2 = _feature_transform(h_act, w_cat_pad, bm=bm, out_dtype=compute_dtype)
    out = _gcn_aggregate(a_pad, xw2, b_cat_pad, apply_relu=False,
                         out_dtype=jnp.float32, bm=bm, bk=bk,
                         vmem_budget=vmem_budget)

    mu = out[:n, :c]
    logstd = out[:n, c:2 * c]
    return mu, logstd


def _reference(x, edge_index, params):
    a = gcn_normalized_adjacency(edge_index, x.shape[0])
    h = jnp.maximum(a @ (x @ params["w1"]) + params["b1"], 0.0)
    mu = a @ (h @ params["wmu"]) + params["bmu"]
    ls = a @ (h @ params["wls"]) + params["bls"]
    return mu, ls


if __name__ == "__main__":
    key = jax.random.PRNGKey(0)
    k_x, k_p = jax.random.split(key)

    num_nodes = 16
    in_channels = 8
    out_channels = 4

    # Deterministic node features.
    x = jax.random.normal(k_x, (num_nodes, in_channels), jnp.float32)

    # Deterministic undirected ring graph as edge_index (2, 2*N).
    idx = jnp.arange(num_nodes)
    nxt = (idx + 1) % num_nodes
    edge_index = jnp.stack(
        [jnp.concatenate([idx, nxt]), jnp.concatenate([nxt, idx])], axis=0
    ).astype(jnp.int32)

    params = init_params(k_p, in_channels, out_channels)

    mu, logstd = variational_encoder(x, edge_index, params)
    jax.block_until_ready((mu, logstd))

    assert mu.shape == (num_nodes, out_channels)
    assert logstd.shape == (num_nodes, out_channels)

    # Loose check vs. plain-JAX f32 reference (kernel uses bf16 MXU inputs).
    mu_ref, ls_ref = _reference(x, edge_index, params)
    assert jnp.allclose(mu, mu_ref, atol=5e-2, rtol=5e-2)
    assert jnp.allclose(logstd, ls_ref, atol=5e-2, rtol=5e-2)

    print("KERNEL_OK")
</pallas_src>

<mosaic_0001>
module attributes {stable_mosaic.version = 11 : i64} {
  func.func @feature_transform_kernel(%arg0: i32, %arg1: memref<64x128xbf16, #tpu.memory_space<vmem>>, %arg2: memref<128x128xbf16, #tpu.memory_space<vmem>>, %arg3: memref<64x128xbf16, #tpu.memory_space<vmem>>) attributes {dimension_semantics = [#tpu.dimension_semantics<parallel>], iteration_bounds = array<i64: 2>, scalar_prefetch = 0 : i64, scratch_operands = 0 : i64, tpu.core_type = #tpu.core_type<tc>, window_params = [{transform_indices = @transform_0, window_bounds = array<i64: 64, 128>}, {pipeline_mode = #tpu.pipeline_mode<synchronous>, transform_indices = @transform_1, window_bounds = array<i64: 128, 128>}, {transform_indices = @transform_2, window_bounds = array<i64: 64, 128>}]} {
    %c0 = arith.constant 0 : index
    %c0_0 = arith.constant 0 : index
    %0 = vector.load %arg1[%c0, %c0_0] : memref<64x128xbf16, #tpu.memory_space<vmem>>, vector<64x128xbf16>
    %c0_1 = arith.constant 0 : index
    %c0_2 = arith.constant 0 : index
    %1 = vector.load %arg2[%c0_1, %c0_2] : memref<128x128xbf16, #tpu.memory_space<vmem>>, vector<128x128xbf16>
    %cst = arith.constant dense<0.000000e+00> : vector<64x128xf32>
    %2 = tpu.matmul %0, %1, %cst {dimension_numbers = #tpu.dot_dimension_numbers<[1], [0], [0], [1], [0, 0, 1, 1], [], []>} : vector<64x128xbf16>, vector<128x128xbf16>, vector<64x128xf32> -> vector<64x128xf32>
    %3 = arith.truncf %2 : vector<64x128xf32> to vector<64x128xbf16>
    %c0_3 = arith.constant 0 : index
    %c0_4 = arith.constant 0 : index
    %4 = vector.load %arg3[%c0_3, %c0_4] : memref<64x128xbf16, #tpu.memory_space<vmem>>, vector<64x128xbf16>
    tpu.vector_store %arg3[%c0_3, %c0_4], %3 {strides = array<i32>} : memref<64x128xbf16, #tpu.memory_space<vmem>>, vector<64x128xbf16>,
    return
  }
  func.func @transform_0(%arg0: i32) -> (i32, i32) {
    %c0_i32 = arith.constant 0 : i32
    %c0_i32_0 = arith.constant 0 : i32
    return %arg0, %c0_i32 : i32, i32
  }
  func.func @transform_1(%arg0: i32) -> (i32, i32) {
    %c0_i32 = arith.constant 0 : i32
    %c0_i32_0 = arith.constant 0 : i32
    %c0_i32_1 = arith.constant 0 : i32
    return %c0_i32, %c0_i32_0 : i32, i32
  }
  func.func @transform_2(%arg0: i32) -> (i32, i32) {
    %c0_i32 = arith.constant 0 : i32
    %c0_i32_0 = arith.constant 0 : i32
    return %arg0, %c0_i32 : i32, i32
  }
}

</mosaic_0001>

<llo_original>
// kernel: tpu_custom_call.1
$region0: #{tpu_custom_call.1}
  #allocation0 [shape = 'u32[]', space=smem, size = 0x4, offset = 0x4, fixed_abs, tag = 'smem constant byte address 0x4 - core index']
  #allocation1 [shape = 'u32[144,128]{1,0:T(1,128)}', space=vmem, size = 0x12000, scoped, tag = 'internal scratch']
  %s0 = inlined_call_operand.hbm [shape: bf16[128,128], index: 0, kind: input, shape index: {}]
  %s1 = inlined_call_operand.hbm [shape: bf16[128,128], index: 1, kind: input, shape index: {}]
  %s2 = inlined_call_operand.hbm [shape: bf16[128,128], index: 2, kind: output, shape index: {}]
  %s3 = sld [smem:[#allocation0]]
  $region49: #{tpu_custom_call.1} parent=0
    _
  %s5 = ssub.s32 1, %s3
  %s6 = scalar_select 0, %s5, %s3
  $region1: #{tpu_custom_call.1} parent=0
    #allocation2 [shape = 'u8[32768]{0}', space=vmem, size = 0x8000, scoped, tag = 'input window, operand 0']
    #allocation3 [shape = 's32[2]{0}', space=sflag, size = 0x8, scoped, tag = 'scoped memory for tpu_custom_call.1']
    #allocation4 [shape = 's32[2]{0}', space=sflag, size = 0x8, scoped, tag = 'scoped memory for tpu_custom_call.1']
    #allocation5 [shape = 'u8[32768]{0}', space=vmem, size = 0x8000, scoped, tag = 'input window, operand 1, single buffered']
    #allocation6 [shape = 's32[1]{0}', space=sflag, size = 0x4, scoped, tag = 'scoped memory for tpu_custom_call.1']
    #allocation7 [shape = 'u8[32768]{0}', space=vmem, size = 0x8000, scoped, tag = 'output window, operand 0']
    %7 = vsyncpa [#allocation3], 0
    %s8 = scalar_lea.sflag [#allocation3], 1
    %9 = vsyncpa %s8, 0
    %10 = vsyncpa [#allocation6], 0
    %11 = vsyncpa [#allocation4], 0
    %s12 = scalar_lea.sflag [#allocation4], 1
    %13 = vsyncpa %s12, 0
    loop: start=0, step=1, limit=4
    $region2: #{tpu_custom_call.1} parent=1 // loop_pre_header
      _
    $region3: #{tpu_custom_call.1} parent=1 // loop_header
      %s15 = sphi 0, %s19
      %p16 = scmp.ge.s32.totalorder %s15, 4
      %s25 = sphi 0, %s27
      %s28 = sphi 0, %s25
      %s29 = sphi 0, %s28
      %s45 = sphi 0, %s29
      %s49 = sphi 0, %s49
      %s51 = sphi 0, %s49
      %s52 = sphi 0, %s51
      %s66 = sphi 0, %s52
      %s72 = sphi 0, %s74
      %s75 = sphi 0, %s72
      %s76 = sphi 0, %s75
      %s92 = sphi 0, %s76
    $region4: #{tpu_custom_call.1} parent=1 // loop_header_branch
      %18 = sbr.rel (%p16) target = $region8
    $region5: #{tpu_custom_call.1} parent=1 // loop_body
      %s20 = ssub.s32 %s15, 1
      %s21 = ssub.s32 %s15, 2
      %s22 = sadd.s32 %s15, 1
      %s23 = ssub.s32 %s15, %s22
      %p24 = scmp.eq.s32.totalorder %s23, 0
      %s26 = sadd.s32 %s25, 1
      %s27 = scalar_select %p24, %s25, %s26
      %p30 = pneg %p24
      %p31 = scmp.eq.s32.totalorder %s15, 1
      %p32 = por %p30, %p31
      %p33 = scmp.ne.s32.totalorder %s25, %s28
      %p34 = scmp.eq.s32.totalorder %s15, 0
      %p35 = por %p33, %p34
      %p36 = scmp.ne.s32.totalorder %s25, %s28
      %p37 = scmp.eq.s32.totalorder %s20, 1
      %p38 = por %p36, %p37
      %p39 = scmp.ne.s32.totalorder %s28, %s29
      %p40 = scmp.eq.s32.totalorder %s20, 0
      %p41 = por %p39, %p40
      %p42 = scmp.ne.s32.totalorder %s28, %s29
      %p43 = scmp.eq.s32.totalorder %s21, 1
      %p44 = por %p42, %p43
      %p46 = scmp.ne.s32.totalorder %s29, %s45
      %p47 = scmp.eq.s32.totalorder %s21, 0
      %p48 = por %p46, %p47
      %s50 = sadd.s32 %s49, 1
      %p53 = scmp.eq.s32.totalorder %s15, 1
      %p54 = scmp.ne.s32.totalorder %s49, %s51
      %p55 = scmp.eq.s32.totalorder %s15, 0
      %p56 = por %p54, %p55
      %p57 = scmp.ne.s32.totalorder %s49, %s51
      %p58 = scmp.eq.s32.totalorder %s20, 1
      %p59 = por %p57, %p58
      %p60 = scmp.ne.s32.totalorder %s51, %s52
      %p61 = scmp.eq.s32.totalorder %s20, 0
      %p62 = por %p60, %p61
      %p63 = scmp.ne.s32.totalorder %s51, %s52
      %p64 = scmp.eq.s32.totalorder %s21, 1
      %p65 = por %p63, %p64
      %p67 = scmp.ne.s32.totalorder %s52, %s66
      %p68 = scmp.eq.s32.totalorder %s21, 0
      %p69 = por %p67, %p68
      %s70 = ssub.s32 %s15, %s22
      %p71 = scmp.eq.s32.totalorder %s70, 0
      %s73 = sadd.s32 %s72, 1
      %s74 = scalar_select %p71, %s72, %s73
      %p77 = pneg %p71
      %p78 = scmp.eq.s32.totalorder %s15, 1
      %p79 = por %p77, %p78
      %p80 = scmp.ne.s32.totalorder %s72, %s75
      %p81 = scmp.eq.s32.totalorder %s15, 0
      %p82 = por %p80, %p81
      %p83 = scmp.ne.s32.totalorder %s72, %s75
      %p84 = scmp.eq.s32.totalorder %s20, 1
      %p85 = por %p83, %p84
      %p86 = scmp.ne.s32.totalorder %s75, %s76
      %p87 = scmp.eq.s32.totalorder %s20, 0
      %p88 = por %p86, %p87
      %p89 = scmp.ne.s32.totalorder %s75, %s76
      %p90 = scmp.eq.s32.totalorder %s21, 1
      %p91 = por %p89, %p90
      %p93 = scmp.ne.s32.totalorder %s76, %s92
      %p94 = scmp.eq.s32.totalorder %s21, 0
      %p95 = por %p93, %p94
      %p96 = scmp.le.s32.totalorder 1, %s15
      %p97 = scmp.lt.s32.totalorder %s15, 3
      %p98 = pnand %p96, %p97
      %p99 = pneg %p98
      // Predicated region
      $region9: #{tpu_custom_call.1} parent=5 // pred_check
        _
      $region10: #{tpu_custom_call.1} parent=5 // pred_check_branch
        %101 = sbr.rel (%p98) target = $region12
      $region11: #{tpu_custom_call.1} parent=5 // pred_region
        %s102 = ssub.s32 %s15, 1
        // Predicated region
        $region13: #{tpu_custom_call.1} parent=11 // pred_check
          %p103 = pneg %p62
        $region14: #{tpu_custom_call.1} parent=11 // pred_check_branch
          %105 = sbr.rel (%p103) target = $region16
        $region15: #{tpu_custom_call.1} parent=11 // pred_region
          %s107 = ssub.s32 1024, 1024
          %108 = vsyncadd [#allocation6], %s107
          %s109 = sshll.u32 [#allocation5], 4
          %s110 = int_to_ptr.vmem [resolvable:$true] %s109
          %115 = dma.hbm_to_vmem [thread:$0]  %s1, 1024, %s110, [#allocation6], 64, 64, 4
        $region16: #{tpu_custom_call.1} parent=11 // pred_fallthru
          _
      $region12: #{tpu_custom_call.1} parent=5 // pred_fallthru
        _
      %p116 = scmp.lt.s32.totalorder %s15, 2
      // Predicated region
      $region17: #{tpu_custom_call.1} parent=5 // pred_check
        %p117 = pneg %p116
      $region18: #{tpu_custom_call.1} parent=5 // pred_check_branch
        %119 = sbr.rel (%p117) target = $region20
      $region19: #{tpu_custom_call.1} parent=5 // pred_region
        // Predicated region
        $region21: #{tpu_custom_call.1} parent=19 // pred_check
          %p120 = pneg %p35
        $region22: #{tpu_custom_call.1} parent=19 // pred_check_branch
          %122 = sbr.rel (%p120) target = $region24
        $region23: #{tpu_custom_call.1} parent=19 // pred_region
          %s123 = sand.u32 %s25, 1
          %s124 = scalar_lea.sflag [#allocation3], %s123
          %s125 = sand.u32 %s25, 1
          %s126 = smul.addr %s125, 32
          %s127 = scalar_lea.vmem [#allocation2], %s126
          %s128 = smul.u32 8, %s15
          %s130 = ssub.s32 512, 512
          %131 = vsyncadd %s124, %s130
          %s132 = smul.addr %s128, 64
          %s133 = scalar_lea.hbm %s0, %s132
          %s134 = sshll.u32 %s127, 4
          %s135 = int_to_ptr.vmem [resolvable:$true] %s134
          %140 = dma.hbm_to_vmem [thread:$0]  %s133, 512, %s135, %s124, 64, 64, 4
        $region24: #{tpu_custom_call.1} parent=19 // pred_fallthru
          _
      $region20: #{tpu_custom_call.1} parent=5 // pred_fallthru
        _
      %p141 = scmp.le.s32.totalorder 1, %s15
      %p142 = scmp.lt.s32.totalorder %s15, 3
      %p143 = pnand %p141, %p142
      %p144 = pneg %p143
      // Predicated region
      $region25: #{tpu_custom_call.1} parent=5 // pred_check
        _
      $region26: #{tpu_custom_call.1} parent=5 // pred_check_branch
        %146 = sbr.rel (%p143) target = $region28
      $region27: #{tpu_custom_call.1} parent=5 // pred_region
        %s147 = ssub.s32 %s15, 1
        %s148 = sand.u32 %s28, 1
        %s149 = scalar_lea.sflag [#allocation3], %s148
        %s150 = sand.u32 %s28, 1
        %s151 = smul.addr %s150, 32
        %s152 = scalar_lea.vmem [#allocation2], %s151
        // Predicated region
        $region29: #{tpu_custom_call.1} parent=27 // pred_check
          %p153 = pneg %p41
        $region30: #{tpu_custom_call.1} parent=27 // pred_check_branch
          %155 = sbr.rel (%p153) target = $region32
        $region31: #{tpu_custom_call.1} parent=27 // pred_region
          %156 = dma.done %s149, 512
        $region32: #{tpu_custom_call.1} parent=27 // pred_fallthru
          _
        // Predicated region
        $region33: #{tpu_custom_call.1} parent=27 // pred_check
          %p157 = pneg %p62
        $region34: #{tpu_custom_call.1} parent=27 // pred_check_branch
          %159 = sbr.rel (%p157) target = $region36
        $region35: #{tpu_custom_call.1} parent=27 // pred_region
          %160 = dma.done [#allocation6], 1024
        $region36: #{tpu_custom_call.1} parent=27 // pred_fallthru
          _
        %s161 = sand.u32 %s28, 1
        %s162 = scalar_lea.sflag [#allocation3], %s161
        %s163 = sand.u32 %s28, 1
        %s164 = smul.addr %s163, 32
        %s165 = scalar_lea.vmem [#allocation2], %s164
        %p166 = pneg %p41
        %p167 = pneg %p38
        %p168 = pneg %p62
        %p169 = pneg %p59
        %p170 = pneg %p88
        %p171 = pneg %p85
        %s172 = sand.u32 %s75, 1
        %s173 = scalar_lea.sflag [#allocation4], %s172
        %s174 = sand.u32 %s75, 1
        %s175 = smul.addr %s174, 32
        %s176 = scalar_lea.vmem [#allocation7], %s175
        %s177 = smul.u32 8, %s20
        %s178 = smul.u32 8, %s20
        %v180 = vld [vmem:[%s152] sm:$0xf]
        %v181 = vld [vmem:[%s152 + $0x4] sm:$0xf]
        %v182 = vld [vmem:[%s152 + $0x8] sm:$0xf]
        %v183 = vld [vmem:[%s152 + $0xc] sm:$0xf]
        %v184 = vld [vmem:[%s152 + $0x10] sm:$0xf]
        %v185 = vld [vmem:[%s152 + $0x14] sm:$0xf]
        %v186 = vld [vmem:[%s152 + $0x18] sm:$0xf]
        %v187 = vld [vmem:[%s152 + $0x1c] sm:$0xf]
        %v188 = vld [vmem:[#allocation5] sm:$0xf]
        %v189 = vld [vmem:[#allocation5 + $0x4] sm:$0xf]
        %v190 = vld [vmem:[#allocation5 + $0x8] sm:$0xf]
        %v191 = vld [vmem:[#allocation5 + $0xc] sm:$0xf]
        %v192 = vld [vmem:[#allocation5 + $0x10] sm:$0xf]
        %v193 = vld [vmem:[#allocation5 + $0x14] sm:$0xf]
        %v194 = vld [vmem:[#allocation5 + $0x18] sm:$0xf]
        %v195 = vld [vmem:[#allocation5 + $0x1c] sm:$0xf]
        %v196 = vld [vmem:[#allocation5 + $0x20] sm:$0xf]
        %v197 = vld [vmem:[#allocation5 + $0x24] sm:$0xf]
        %v198 = vld [vmem:[#allocation5 + $0x28] sm:$0xf]
        %v199 = vld [vmem:[#allocation5 + $0x2c] sm:$0xf]
        %v200 = vld [vmem:[#allocation5 + $0x30] sm:$0xf]
        %v201 = vld [vmem:[#allocation5 + $0x34] sm:$0xf]
        %v202 = vld [vmem:[#allocation5 + $0x38] sm:$0xf]
        %v203 = vld [vmem:[#allocation5 + $0x3c] sm:$0xf]
        %v212 = vunpack.c.l.b16 %v180
        %v213 = vunpack.c.l.b16 %v181
        %v214 = vunpack.c.l.b16 %v182
        %v215 = vunpack.c.l.b16 %v183
        %v216 = vunpack.c.l.b16 %v184
        %v217 = vunpack.c.l.b16 %v185
        %v218 = vunpack.c.l.b16 %v186
        %v219 = vunpack.c.l.b16 %v187
        %v220 = vpack.c.b16 %v213, %v212
        %v221 = vpack.c.b16 %v215, %v214
        %v222 = vpack.c.b16 %v217, %v216
        %v223 = vpack.c.b16 %v219, %v218
        %v244 = vunpack.c.l.b16 %v188
        %v245 = vunpack.c.l.b16 %v189
        %v246 = vunpack.c.l.b16 %v190
        %v247 = vunpack.c.l.b16 %v191
        %v248 = vunpack.c.l.b16 %v192
        %v249 = vunpack.c.l.b16 %v193
        %v250 = vunpack.c.l.b16 %v194
        %v251 = vunpack.c.l.b16 %v195
        %v252 = vunpack.c.l.b16 %v196
        %v253 = vunpack.c.l.b16 %v197
        %v254 = vunpack.c.l.b16 %v198
        %v255 = vunpack.c.l.b16 %v199
        %v256 = vunpack.c.l.b16 %v200
        %v257 = vunpack.c.l.b16 %v201
        %v258 = vunpack.c.l.b16 %v202
        %v259 = vunpack.c.l.b16 %v203
        %v260 = vpack.c.b16 %v245, %v244
        %v261 = vpack.c.b16 %v247, %v246
        %v262 = vpack.c.b16 %v249, %v248
        %v263 = vpack.c.b16 %v251, %v250
        %v264 = vpack.c.b16 %v253, %v252
        %v265 = vpack.c.b16 %v255, %v254
        %v266 = vpack.c.b16 %v257, %v256
        %v267 = vpack.c.b16 %v259, %v258
        %276 = vmatprep.subr.bf16.mxu0 0
        %277 = vmatpush1.bf16.msra.mxu0 %v260
        %278 = vmatprep.subr.bf16.mxu0 0
        %279 = vmatpush1.bf16.msra.mxu0 %v261
        %280 = vmatprep.subr.bf16.mxu0 0
        %281 = vmatpush1.bf16.msra.mxu0 %v262
        %282 = vmatprep.subr.bf16.mxu0 0
        %283 = vmatpush1.bf16.msra.mxu0 %v263
        %284 = vmatprep.subr.bf16.mxu0 0
        %285 = vmatpush1.bf16.msra.mxu0 %v264
        %286 = vmatprep.subr.bf16.mxu0 0
        %287 = vmatpush1.bf16.msra.mxu0 %v265
        %288 = vmatprep.subr.bf16.mxu0 0
        %289 = vmatpush1.bf16.msra.mxu0 %v266
        %290 = vmatprep.subr.bf16.mxu0 0
        %291 = vmatpush1.bf16.msra.mxu0 %v267
        %292 = vmatprep.subr.bf16.mxu0 0
        %293 = vmatpush1.bf16.msra.mxu0 0
        %294 = vmatprep.subr.bf16.mxu0 0
        %295 = vmatpush1.bf16.msra.mxu0 0
        %296 = vmatprep.subr.bf16.mxu0 0
        %297 = vmatpush1.bf16.msra.mxu0 0
        %298 = vmatprep.subr.bf16.mxu0 0
        %299 = vmatpush1.bf16.msra.mxu0 0
        %300 = vmatprep.subr.bf16.mxu0 0
        %301 = vmatpush1.bf16.msra.mxu0 0
        %302 = vmatprep.subr.bf16.mxu0 0
        %303 = vmatpush1.bf16.msra.mxu0 0
        %304 = vmatprep.subr.bf16.mxu0 0
        %305 = vmatpush1.bf16.msra.mxu0 0
        %306 = vmatprep.subr.bf16.mxu0 0
        %307 = vmatpush1.bf16.msra.mxu0 0
        %308 = vmatprep.mubr.bf16.mxu0 0
        %309 = vmatmul.mubr.bf16.gmra.mrb[0].mxu0 %v220
        %v310 = vpop.f32.mrb[0].mxu0
        %v311 = vadd.f32 0.0, %v310
        %v312 = vpop.f32.mrb[0].mxu0
        %v313 = vpop.f32.mrb[0].mxu0
        %v314 = vadd.f32 0.0, %v313
        %v315 = vpop.f32.mrb[0].mxu0
        %316 = vmatprep.mubr.bf16.mxu0 0
        %317 = vmatmul.mubr.bf16.gmra.mrb[0].mxu0 %v221
        %v318 = vpop.f32.mrb[0].mxu0
        %v319 = vadd.f32 0.0, %v318
        %v320 = vpop.f32.mrb[0].mxu0
        %v321 = vpop.f32.mrb[0].mxu0
        %v322 = vadd.f32 0.0, %v321
        %v323 = vpop.f32.mrb[0].mxu0
        %324 = vmatprep.mubr.bf16.mxu0 0
        %325 = vmatmul.mubr.bf16.gmra.mrb[0].mxu0 %v222
        %v326 = vpop.f32.mrb[0].mxu0
        %v327 = vadd.f32 0.0, %v326
        %v328 = vpop.f32.mrb[0].mxu0
        %v329 = vpop.f32.mrb[0].mxu0
        %v330 = vadd.f32 0.0, %v329
        %v331 = vpop.f32.mrb[0].mxu0
        %332 = vmatprep.mubr.bf16.mxu0 0
        %333 = vmatmul.mubr.bf16.gmra.mrb[0].mxu0 %v223
        %v334 = vpop.f32.mrb[0].mxu0
        %v335 = vadd.f32 0.0, %v334
        %v336 = vpop.f32.mrb[0].mxu0
        %v337 = vpop.f32.mrb[0].mxu0
        %v338 = vadd.f32 0.0, %v337
        %v339 = vpop.f32.mrb[0].mxu0
        %340 = vdwg.mxu0
        %v341 = vpack.c.bf16 %v314, %v311
        %v342 = vpack.c.bf16 %v322, %v319
        %v343 = vpack.c.bf16 %v330, %v327
        %v344 = vpack.c.bf16 %v338, %v335
        %v349 = vunpack.c.l.b16 %v341
        %v350 = vunpack.c.h.b16 %v341
        %v351 = vunpack.c.l.b16 %v342
        %v352 = vunpack.c.h.b16 %v342
        %v353 = vunpack.c.l.b16 %v343
        %v354 = vunpack.c.h.b16 %v343
        %v355 = vunpack.c.l.b16 %v344
        %v356 = vunpack.c.h.b16 %v344
        %v357 = vpack.c.b16 %v349, %v349
        %v358 = vpack.c.b16 %v350, %v350
        %v359 = vpack.c.b16 %v351, %v351
        %v360 = vpack.c.b16 %v352, %v352
        %v361 = vpack.c.b16 %v353, %v353
        %v362 = vpack.c.b16 %v354, %v354
        %v363 = vpack.c.b16 %v355, %v355
        %v364 = vpack.c.b16 %v356, %v356
        %373 = vst [vmem:[%s176] sm:$0xf] %v357
        %374 = vst [vmem:[%s176 + $0x4] sm:$0xf] %v358
        %375 = vst [vmem:[%s176 + $0x8] sm:$0xf] %v359
        %376 = vst [vmem:[%s176 + $0xc] sm:$0xf] %v360
        %377 = vst [vmem:[%s176 + $0x10] sm:$0xf] %v361
        %378 = vst [vmem:[%s176 + $0x14] sm:$0xf] %v362
        %379 = vst [vmem:[%s176 + $0x18] sm:$0xf] %v363
        %380 = vst [vmem:[%s176 + $0x1c] sm:$0xf] %v364
        %s381 = sand.u32 %s75, 1
        %s382 = scalar_lea.sflag [#allocation4], %s381
        %s383 = sand.u32 %s75, 1
        %s384 = smul.addr %s383, 32
        %s385 = scalar_lea.vmem [#allocation7], %s384
        // Predicated region
        $region37: #{tpu_custom_call.1} parent=27 // pred_check
          %p386 = pneg %p85
        $region38: #{tpu_custom_call.1} parent=27 // pred_check_branch
          %388 = sbr.rel (%p386) target = $region40
        $region39: #{tpu_custom_call.1} parent=27 // pred_region
          %s389 = smul.u32 8, %s20
          %s391 = ssub.s32 512, 512
          %392 = vsyncadd %s382, %s391
          %s393 = smul.addr %s389, 64
          %s394 = scalar_lea.hbm %s2, %s393
          %s395 = sshll.u32 %s385, 4
          %s396 = int_to_ptr.vmem [resolvable:$true] %s395
          %401 = dma.vmem_to_hbm [thread:$0]  %s396, 512, %s394, %s382, 64, 64, 4
        $region40: #{tpu_custom_call.1} parent=27 // pred_fallthru
          _
      $region28: #{tpu_custom_call.1} parent=5 // pred_fallthru
        _
      %p402 = scmp.le.s32.totalorder 2, %s15
      // Predicated region
      $region41: #{tpu_custom_call.1} parent=5 // pred_check
        %p403 = pneg %p402
      $region42: #{tpu_custom_call.1} parent=5 // pred_check_branch
        %405 = sbr.rel (%p403) target = $region44
      $region43: #{tpu_custom_call.1} parent=5 // pred_region
        %s406 = ssub.s32 %s15, 2
        // Predicated region
        $region45: #{tpu_custom_call.1} parent=43 // pred_check
          %p407 = pneg %p91
        $region46: #{tpu_custom_call.1} parent=43 // pred_check_branch
          %409 = sbr.rel (%p407) target = $region48
        $region47: #{tpu_custom_call.1} parent=43 // pred_region
          %s410 = sand.u32 %s76, 1
          %s411 = scalar_lea.sflag [#allocation4], %s410
          %s412 = sand.u32 %s76, 1
          %s413 = smul.addr %s412, 32
          %s414 = scalar_lea.vmem [#allocation7], %s413
          %415 = dma.done %s411, 512
        $region48: #{tpu_custom_call.1} parent=43 // pred_fallthru
          _
      $region44: #{tpu_custom_call.1} parent=5 // pred_fallthru
        _
    $region6: #{tpu_custom_call.1} parent=1 // loop_footer
      %s19 = sadd.s32 1, %s15
    $region7: #{tpu_custom_call.1} parent=1 // loop_footer_branch
      %14 = sbr.rel target = $region3
    $region8: #{tpu_custom_call.1} parent=1 // loop_exit
      _
    %416 = vsyncpa [#allocation3], 1
    %s417 = scalar_lea.sflag [#allocation3], 1
    %418 = vsyncpa %s417, 1
    %419 = vsyncpa [#allocation6], 1
    %420 = vsyncpa [#allocation4], 1
    %s421 = scalar_lea.sflag [#allocation4], 1
    %422 = vsyncpa %s421, 1

</llo_original>
